<compile_context>
chip_gen: v7x
topology: tpu7x:2x2x1
jax: 0.10.0
libtpu: 0.0.40
codegen_flags: <defaults>
</compile_context>

<pallas_src>
import functools
import math

import numpy as np
import jax
import jax.numpy as jnp
from jax.experimental import pallas as pl
from jax.experimental.pallas import tpu as pltpu

# ----------------------------- configuration -----------------------------
IMG_CH = 6
CIN_PAD = 8                         # intro conv input channels padded to 8 per pixel
OUT_CH = 3
WIDTH = 8
ENC_BLKS = [1, 1]
DEC_BLKS = [1, 1]
MID_BLKS = 1
TIME_DIM = WIDTH * 4
NUM_HEADS = 8
POOL_SIZE = 20
TOP_K = 5
LEN_MIN, LEN_MAX = 5, 64
PROMPT_BETA = 0.5
QE_DIM = 768
LN_EPS = 1e-5                       # nn.LayerNorm default eps

STORE_DTYPE = jnp.bfloat16          # feature maps between kernels


# ----------------------------- BlockSpec helpers -----------------------------

def _shared_spec(a):
    zeros = (0,) * a.ndim
    return pl.BlockSpec(a.shape, lambda *args, _z=zeros: _z)


def _batched_spec(a):
    rest = (0,) * (a.ndim - 1)
    return pl.BlockSpec((1,) + a.shape[1:], lambda b, *args, _r=rest: (b,) + _r)


# =============================== Pallas kernels ===============================

def _conv3x3_accum(x, w_ref, H, C):
    """9-tap 3x3 conv on a lane-dense (H, W*C) slab.

    dy (row) padding: roll + row masks.  dx (column) padding: folded into the
    block-diagonal per-tap weights (border blocks pre-zeroed).  w_ref: (9, Win, Wout).
    """
    xb = x.astype(jnp.bfloat16)
    lanes = xb.shape[1]
    r_iota = jax.lax.broadcasted_iota(jnp.int32, (H, 1), 0)
    acc = None
    for dy in range(3):
        if dy == 0:
            xr = jnp.where(r_iota >= 1, pltpu.roll(xb, shift=1, axis=0),
                           jnp.zeros_like(xb))
        elif dy == 2:
            xr = jnp.where(r_iota <= H - 2, pltpu.roll(xb, shift=H - 1, axis=0),
                           jnp.zeros_like(xb))
        else:
            xr = xb
        for dx in range(3):
            if dx == 0:
                t = pltpu.roll(xr, shift=C, axis=1)
            elif dx == 2:
                t = pltpu.roll(xr, shift=lanes - C, axis=1)   # non-negative shift
            else:
                t = xr
            c = jnp.dot(t, w_ref[dy * 3 + dx], preferred_element_type=jnp.float32)
            acc = c if acc is None else acc + c
    return acc


def _intro_kernel(x_ref, w_ref, b_ref, o_ref, *, H, C):
    acc = _conv3x3_accum(x_ref[0], w_ref, H, C) + b_ref[...]
    o_ref[0] = acc.astype(o_ref.dtype)


def _ending_kernel(x_ref, x0_ref, w_ref, b_ref, o_ref, *, H, C):
    xs = x_ref[0].astype(jnp.float32) + x0_ref[0].astype(jnp.float32)   # fused residual
    acc = _conv3x3_accum(xs, w_ref, H, C) + b_ref[...]
    o_ref[0] = acc.astype(o_ref.dtype)


def _time_mlp_kernel(e_ref, w1a, b1a, w1b, b1b, w2a, b2a, w2b, b2b, o_ref):
    e = e_ref[...].astype(jnp.float32)
    g1 = ((jnp.dot(e, w1a[...], preferred_element_type=jnp.float32) + b1a[...]) *
          (jnp.dot(e, w1b[...], preferred_element_type=jnp.float32) + b1b[...]))
    ta = jnp.dot(g1, w2a[...], preferred_element_type=jnp.float32) + b2a[...]
    tb = jnp.dot(g1, w2b[...], preferred_element_type=jnp.float32) + b2b[...]
    o_ref[...] = ta * tb            # = SimpleGate(time_mlp(t)), shared by every block


def _qfe_kernel(lw_ref, qs_ref, lemb, w1, b1, g, be, w2, b2, o_ref, *, eps):
    qe = jnp.dot(lw_ref[0], lemb[...], preferred_element_type=jnp.float32)   # (1, 768)
    q = qs_ref[0] * w1[...] + b1[...]
    mu = jnp.mean(q, axis=-1, keepdims=True)
    var = jnp.mean(jnp.square(q - mu), axis=-1, keepdims=True)
    q = (q - mu) * jax.lax.rsqrt(var + eps) * g[...] + be[...]
    # TODO(synk): reference nn.GELU is exact erf-GELU; tanh approximation used here.
    q = jax.nn.gelu(q, approximate=True)
    q = jnp.dot(q, w2[...], preferred_element_type=jnp.float32) + b2[...]
    o_ref[0] = qe + q


def _prompt_weights_kernel(qs_ref, w1, b1, g, be, w2, b2, keysT, o_ref,
                           *, eps, sim_scale):
    q = qs_ref[0] * w1[...] + b1[...]
    mu = jnp.mean(q, axis=-1, keepdims=True)
    var = jnp.mean(jnp.square(q - mu), axis=-1, keepdims=True)
    q = (q - mu) * jax.lax.rsqrt(var + eps) * g[...] + be[...]
    q = jnp.maximum(q, 0.0)
    qf = jnp.dot(q, w2[...], preferred_element_type=jnp.float32) + b2[...]
    kT = keysT[...]
    dots = jnp.dot(qf, kT, preferred_element_type=jnp.float32)
    nq = jnp.sqrt(jnp.sum(qf * qf, axis=-1, keepdims=True))
    nk = jnp.sqrt(jnp.sum(kT * kT, axis=0, keepdims=True))
    sims = dots / jnp.maximum(nq * nk, 1e-8)
    s = sims * sim_scale
    s = s - jnp.max(s, axis=-1, keepdims=True)
    e = jnp.exp(s)
    o_ref[0] = e / jnp.sum(e, axis=-1, keepdims=True)      # exact softmax


def _naf_block_kernel(x_ref, tg_ref, tmodw_ref, lnp_ref, c1_ref, dw_ref, sca_ref,
                      c3_ref, c4_ref, c5_ref, vecs_ref, bias_ref, o_ref,
                      *, H, C, WC, eps):
    """One whole NAFBlock, fully fused on the lane-dense (H, W*C) layout."""
    f32, bf16 = jnp.float32, jnp.bfloat16
    x = x_ref[0].astype(f32)                                  # (H, WC)
    bias = bias_ref[...]                                      # (1, 13*WC)
    vecs = vecs_ref[...]                                      # (8, WC)

    # time modulation (the "+1" on scales is folded into the bias)
    tmod = jnp.dot(tg_ref[0], tmodw_ref[...],
                   preferred_element_type=f32) + bias[:, 9 * WC:13 * WC]
    shift_att, scale_att = tmod[:, 0:WC], tmod[:, WC:2 * WC]
    shift_ffn, scale_ffn = tmod[:, 2 * WC:3 * WC], tmod[:, 3 * WC:4 * WC]

    lnp = lnp_ref[...]                                        # group-mean projector
    # --- LayerNorm over channels + modulation ---
    mu = jnp.dot(x, lnp, preferred_element_type=f32)
    d = x - mu
    var = jnp.dot(d * d, lnp, preferred_element_type=f32)
    xn = d * jax.lax.rsqrt(var + eps) * vecs[0:1] + vecs[1:2]
    xn = xn * scale_att + shift_att

    # --- conv1 (1x1, both SimpleGate halves) as one block-diagonal matmul ---
    x1 = jnp.dot(xn.astype(bf16), c1_ref[...],
                 preferred_element_type=f32) + bias[:, 0:2 * WC]        # (H, 2WC)

    # --- depthwise 3x3: rolls (row masks) + pre-masked tiled per-lane weights ---
    r_iota = jax.lax.broadcasted_iota(jnp.int32, (H, 1), 0)
    lanes = 2 * WC
    acc = jnp.zeros((H, lanes), f32)
    for dy in range(3):
        if dy == 0:
            xr = jnp.where(r_iota >= 1, pltpu.roll(x1, shift=1, axis=0),
                           jnp.zeros_like(x1))
        elif dy == 2:
            xr = jnp.where(r_iota <= H - 2, pltpu.roll(x1, shift=H - 1, axis=0),
                           jnp.zeros_like(x1))
        else:
            xr = x1
        for dx in range(3):
            if dx == 0:
                t = pltpu.roll(xr, shift=C, axis=1)
            elif dx == 2:
                t = pltpu.roll(xr, shift=lanes - C, axis=1)   # non-negative shift
            else:
                t = xr
            acc = acc + t * dw_ref[dy * 3 + dx]
    x2 = acc + bias[:, 2 * WC:4 * WC]
    x3 = x2[:, 0:WC] * x2[:, WC:2 * WC]                       # SimpleGate

    # --- SCA (GAP over H here, GAP over W folded into the weight) + conv3 + res ---
    pooled = jnp.mean(x3, axis=0, keepdims=True)
    sca = jnp.dot(pooled.astype(bf16), sca_ref[...],
                  preferred_element_type=f32) + bias[:, 4 * WC:5 * WC]
    x4 = x3 * sca
    x5 = jnp.dot(x4.astype(bf16), c3_ref[...],
                 preferred_element_type=f32) + bias[:, 5 * WC:6 * WC]
    y = x + x5 * vecs[4:5]                                    # beta residual

    # --- FFN branch ---
    mu2 = jnp.dot(y, lnp, preferred_element_type=f32)
    d2 = y - mu2
    var2 = jnp.dot(d2 * d2, lnp, preferred_element_type=f32)
    yn = d2 * jax.lax.rsqrt(var2 + eps) * vecs[2:3] + vecs[3:4]
    yn = yn * scale_ffn + shift_ffn
    f1 = jnp.dot(yn.astype(bf16), c4_ref[...],
                 preferred_element_type=f32) + bias[:, 6 * WC:8 * WC]
    fg = f1[:, 0:WC] * f1[:, WC:2 * WC]
    f3 = jnp.dot(fg.astype(bf16), c5_ref[...],
                 preferred_element_type=f32) + bias[:, 8 * WC:9 * WC]
    # reference: return (x + y * self.gamma, time)  (x = conv5 out, y = residual)
    o_ref[0] = (f3 + y * vecs[5:6]).astype(o_ref.dtype)


def _enh_down_kernel(x_ref, qemb_ref, wp_ref, w3_ref, c1_ref, m_ref, s_ref, bias_ref,
                     enh_ref, down_ref, *, H, C, WC):
    """QualityEnhancer (3x3 -> GELU -> 1x1, gated) fused with the 2x2/s2 downsample."""
    f32, bf16 = jnp.float32, jnp.bfloat16
    x = x_ref[0]                                              # (H, WC) bf16
    bias = bias_ref[...]                                      # (1, 4*WC)
    qw = jax.nn.sigmoid(jnp.dot(qemb_ref[0].astype(bf16), wp_ref[...],
                                preferred_element_type=f32) + bias[:, 2 * WC:3 * WC])
    conv = _conv3x3_accum(x, w3_ref, H, C) + bias[:, 0:WC]
    # TODO(synk): reference nn.GELU is exact erf-GELU; tanh approximation used here.
    e = jax.nn.gelu(conv, approximate=True)
    e = jnp.dot(e.astype(bf16), c1_ref[...], preferred_element_type=f32) + bias[:, WC:2 * WC]
    enh = x.astype(f32) * (1.0 + qw * e)
    enh_ref[0] = enh.astype(enh_ref.dtype)

    # fused 2x2 stride-2 downsample conv (output stays lane-dense: (W/2)*(2C) = WC)
    eb = enh.astype(bf16)
    even = jnp.dot(s_ref[0], eb, preferred_element_type=f32)  # dy = 0 rows
    odd = jnp.dot(s_ref[1], eb, preferred_element_type=f32)   # dy = 1 rows
    down = (jnp.dot(even.astype(bf16), m_ref[0], preferred_element_type=f32)
            + jnp.dot(odd.astype(bf16), m_ref[1], preferred_element_type=f32)
            + bias[:, 3 * WC:4 * WC])
    down_ref[0] = down.astype(down_ref.dtype)


def _up_skip_kernel(x_ref, skip_ref, u_ref, t_ref, o_ref):
    """1x1 conv -> PixelShuffle(2) -> skip add, all as matmuls on lane-dense slabs."""
    f32, bf16 = jnp.float32, jnp.bfloat16
    xc = x_ref[0].astype(bf16)                                # (h, WC)
    h0 = jnp.dot(xc, u_ref[0], preferred_element_type=f32)    # even output rows
    h1 = jnp.dot(xc, u_ref[1], preferred_element_type=f32)    # odd output rows
    out = (jnp.dot(t_ref[0], h0, preferred_element_type=f32)
           + jnp.dot(t_ref[1], h1, preferred_element_type=f32)
           + skip_ref[0].astype(f32))
    o_ref[0] = out.astype(o_ref.dtype)


def _cross_attn_kernel(x_ref, kb_ref, vb_ref, qw, qb, pw, pb, o_ref,
                       *, num_heads, scale):
    """q-proj + per-head softmax attention (block-diag K/V) + out-proj, one batch."""
    x = x_ref[0].astype(jnp.float32)                          # (N, C)
    q = jnp.dot(x, qw[...], preferred_element_type=jnp.float32) + qb[...]
    s = jnp.dot(q, kb_ref[0], preferred_element_type=jnp.float32) * scale
    N, HL = s.shape
    Lh = HL // num_heads
    s3 = s.reshape(N, num_heads, Lh)
    s3 = s3 - jnp.max(s3, axis=-1, keepdims=True)
    p3 = jnp.exp(s3)
    p3 = p3 / jnp.sum(p3, axis=-1, keepdims=True)             # exact softmax
    o = jnp.dot(p3.reshape(N, HL), vb_ref[0], preferred_element_type=jnp.float32)
    o = jnp.dot(o, pw[...], preferred_element_type=jnp.float32) + pb[...]
    o_ref[0] = o.astype(o_ref.dtype)


# ======================= parameter preparation (runs once) =====================

def prep_conv3x3(w9, bias, cin, cout, W, cin_pad=None, cout_pad=None):
    cin_p = cin if cin_pad is None else cin_pad
    cout_p = cout if cout_pad is None else cout_pad
    w = np.zeros((9, cin_p, cout_p), np.float32)
    w[:, :cin, :cout] = np.asarray(w9, np.float32)
    b = np.zeros((cout_p,), np.float32)
    b[:cout] = np.asarray(bias, np.float32)
    eyeW = np.eye(W, dtype=np.float32)
    wblk = np.zeros((9, W * cin_p, W * cout_p), np.float32)
    for k in range(9):
        dx = k % 3
        m = np.kron(eyeW, w[k])
        if dx == 0:
            m[0:cin_p, :] = 0.0                # left-border padding
        if dx == 2:
            m[(W - 1) * cin_p:, :] = 0.0       # right-border padding
        wblk[k] = m
    return dict(w=jnp.asarray(wblk, jnp.bfloat16),
                b=jnp.asarray(np.tile(b, W)[None], jnp.float32),
                C=cin_p)


def prep_naf_block(bp, C, W):
    f32, bf16 = np.float32, jnp.bfloat16
    A = lambda a: np.asarray(a, f32)
    WC = W * C
    eyeW = np.eye(W, dtype=f32)
    blkdiag = lambda m: np.kron(eyeW, m)
    tile = lambda v: np.tile(A(v), W)

    mlp_w, mlp_b = A(bp['mlp_w']), A(bp['mlp_b'])
    tm_w = np.concatenate([np.tile(mlp_w[:, i * C:(i + 1) * C], (1, W))
                           for i in range(4)], axis=1)
    tm_b = np.concatenate([tile(mlp_b[i * C:(i + 1) * C]) for i in range(4)])
    tm_b[WC:2 * WC] += 1.0          # x * (scale_att + 1) + shift_att
    tm_b[3 * WC:4 * WC] += 1.0      # x * (scale_ffn + 1) + shift_ffn

    lnp = np.kron(eyeW, np.ones((C, C), f32) / C)

    c1_w, c1_b = A(bp['c1_w']), A(bp['c1_b'])
    c1 = np.concatenate([blkdiag(c1_w[:, :C]), blkdiag(c1_w[:, C:])], axis=1)
    c1b = np.concatenate([tile(c1_b[:C]), tile(c1_b[C:])])

    c2_w, c2_b = A(bp['c2_w']), A(bp['c2_b'])
    dw = np.zeros((9, 2 * WC), f32)
    for dy in range(3):
        for dx in range(3):
            row = np.concatenate([tile(c2_w[dy, dx, :C]), tile(c2_w[dy, dx, C:])])
            if dx == 0:
                row[0:C] = 0.0
                row[WC:WC + C] = 0.0
            if dx == 2:
                row[WC - C:WC] = 0.0
                row[2 * WC - C:] = 0.0
            dw[dy * 3 + dx] = row
    dwb = np.concatenate([tile(c2_b[:C]), tile(c2_b[C:])])

    sca = np.kron(np.ones((W, W), f32) / W, A(bp['sca_w']))   # GAP over W folded in
    scab = tile(bp['sca_b'])
    c3, c3b = blkdiag(A(bp['c3_w'])), tile(bp['c3_b'])
    c4_w, c4_b = A(bp['c4_w']), A(bp['c4_b'])
    c4 = np.concatenate([blkdiag(c4_w[:, :C]), blkdiag(c4_w[:, C:])], axis=1)
    c4b = np.concatenate([tile(c4_b[:C]), tile(c4_b[C:])])
    c5, c5b = blkdiag(A(bp['c5_w'])), tile(bp['c5_b'])

    vecs = np.zeros((8, WC), f32)
    for i, k in enumerate(['n1_g', 'n1_b', 'n2_g', 'n2_b', 'beta', 'gamma']):
        vecs[i] = tile(bp[k])

    bias = np.concatenate([c1b, dwb, scab, c3b, c4b, c5b, tm_b])[None]   # (1, 13*WC)

    return dict(
        C=C, WC=WC,
        tmod_w=jnp.asarray(tm_w, jnp.float32),
        lnp=jnp.asarray(lnp, jnp.float32),
        c1=jnp.asarray(c1, bf16),
        dw=jnp.asarray(dw, jnp.float32),
        sca=jnp.asarray(sca, bf16),
        c3=jnp.asarray(c3, bf16),
        c4=jnp.asarray(c4, bf16),
        c5=jnp.asarray(c5, bf16),
        vecs=jnp.asarray(vecs, jnp.float32),
        bias=jnp.asarray(bias, jnp.float32),
    )


def prep_enh_down(enh, down_w, down_b, C, H, W):
    f32, bf16 = np.float32, jnp.bfloat16
    A = lambda a: np.asarray(a, f32)
    WC = W * C
    eyeW = np.eye(W, dtype=f32)
    tile = lambda v: np.tile(A(v), W)

    w3_raw = A(enh['w3'])                      # (9, C, C)
    w3 = np.zeros((9, WC, WC), f32)
    for k in range(9):
        dx = k % 3
        m = np.kron(eyeW, w3_raw[k])
        if dx == 0:
            m[0:C, :] = 0.0
        if dx == 2:
            m[(W - 1) * C:, :] = 0.0
        w3[k] = m
    c1 = np.kron(eyeW, A(enh['c1_w']))
    wp = np.tile(A(enh['wp_w']), (1, W))       # (768, WC)

    dwn = A(down_w)                            # (2, 2, C, 2C)
    M = np.zeros((2, WC, WC), f32)
    for dy in range(2):
        for dx in range(2):
            for wo in range(W // 2):
                wi = 2 * wo + dx
                M[dy, wi * C:(wi + 1) * C, wo * 2 * C:(wo + 1) * 2 * C] = dwn[dy, dx]
    S = np.zeros((2, H // 2, H), f32)
    for i in range(H // 2):
        S[0, i, 2 * i] = 1.0
        S[1, i, 2 * i + 1] = 1.0

    bias = np.concatenate([tile(enh['b3']), tile(enh['c1_b']), tile(enh['wp_b']),
                           np.tile(A(down_b), W // 2)])[None]   # (1, 4*WC)
    return dict(C=C, WC=WC,
                w3=jnp.asarray(w3, bf16), c1=jnp.asarray(c1, bf16),
                wp=jnp.asarray(wp, bf16), m=jnp.asarray(M, bf16),
                s=jnp.asarray(S, bf16), bias=jnp.asarray(bias, jnp.float32))


def prep_up(up_w, C, H, W):
    f32, bf16 = np.float32, jnp.bfloat16
    WC = W * C
    Cf = C // 2
    uw = np.asarray(up_w, f32)                 # (C, 2C)
    U = np.zeros((2, WC, WC), f32)
    for dy in range(2):
        for w in range(W):
            for dx in range(2):
                wf = 2 * w + dx
                U[dy, w * C:(w + 1) * C, wf * Cf:(wf + 1) * Cf] = uw[:, (dy * 2 + dx)::4]
    T = np.zeros((2, 2 * H, H), f32)
    for i in range(H):
        T[0, 2 * i, i] = 1.0
        T[1, 2 * i + 1, i] = 1.0
    return dict(U=jnp.asarray(U, bf16), T=jnp.asarray(T, jnp.float32))


def prepare_params(params, H0, W0):
    ps = 2 ** len(ENC_BLKS)
    Hc = H0 + (ps - H0 % ps) % ps
    Wc = W0 + (ps - W0 % ps) % ps
    prep = dict(Hc=Hc, Wc=Wc)
    prep['intro'] = prep_conv3x3(params['intro_w'], params['intro_b'],
                                 IMG_CH, WIDTH, Wc, cin_pad=CIN_PAD)
    prep['ending'] = prep_conv3x3(params['ending_w'], params['ending_b'],
                                  WIDTH, OUT_CH, Wc, cout_pad=WIDTH)
    chan, H, W = WIDTH, Hc, Wc
    prep['enc'] = []
    for stage in params['enc']:
        prep['enc'].append(dict(
            H=H, W=W, C=chan,
            blocks=[prep_naf_block(bp, chan, W) for bp in stage['blocks']],
            enh=prep_enh_down(stage['enh'], stage['down_w'], stage['down_b'],
                              chan, H, W)))
        chan, H, W = chan * 2, H // 2, W // 2
    prep['mid'] = dict(H=H, W=W, C=chan,
                       blocks=[prep_naf_block(bp, chan, W) for bp in params['mid']])
    prep['dec'] = []
    for stage in params['dec']:
        up = prep_up(stage['up_w'], chan, H, W)
        chan, H, W = chan // 2, H * 2, W * 2
        prep['dec'].append(dict(
            H=H, W=W, C=chan, up=up,
            blocks=[prep_naf_block(bp, chan, W) for bp in stage['blocks']]))
    return prep


# =============================== kernel wrappers ===============================

def time_mlp_forward(p, temb):
    B = temb.shape[0]
    f32 = jnp.float32
    w1 = p['time_lin1_w'].astype(f32)
    b1 = p['time_lin1_b'].astype(f32)
    w2 = p['time_lin2_w'].astype(f32)
    b2 = p['time_lin2_b'].astype(f32)
    TD = TIME_DIM
    args = [temb.astype(f32),
            w1[:, :TD], b1[:TD].reshape(1, TD), w1[:, TD:], b1[TD:].reshape(1, TD),
            w2[:, :TD // 2], b2[:TD // 2].reshape(1, TD // 2),
            w2[:, TD // 2:], b2[TD // 2:].reshape(1, TD // 2)]
    out = pl.pallas_call(
        _time_mlp_kernel,
        out_shape=jax.ShapeDtypeStruct((B, TD // 2), f32),
        grid=(1,),
        in_specs=[_shared_spec(a) for a in args],
        out_specs=pl.BlockSpec((B, TD // 2), lambda i: (0, 0)),
        compiler_params=pltpu.CompilerParams(dimension_semantics=("arbitrary",)),
    )(*args)
    return out.reshape(B, 1, TD // 2)


def quality_feature_extractor(qp, qs_np):
    B = qs_np.shape[0]
    f32 = jnp.float32
    # host: piecewise-linear quality-level interpolation (.item() in the reference)
    lw = np.zeros((B, 1, 5), np.float32)
    for b in range(B):
        score = float(qs_np[b, 0])
        lower = max(0, min(3, int(score - 1)))
        upper = lower + 1
        alpha = score - (lower + 1)
        lw[b, 0, lower] = 1.0 - alpha
        lw[b, 0, upper] = alpha
    lw = jnp.asarray(lw)
    qs3 = jnp.asarray(qs_np, f32).reshape(B, 1, 1)
    shared = [qp['level_emb'].astype(f32),
              qp['lp1_w'].reshape(1, 64).astype(f32),
              qp['lp1_b'].reshape(1, 64).astype(f32),
              qp['lp_ln_g'].reshape(1, 64).astype(f32),
              qp['lp_ln_b'].reshape(1, 64).astype(f32),
              qp['lp2_w'].astype(f32),
              qp['lp2_b'].reshape(1, QE_DIM).astype(f32)]
    return pl.pallas_call(
        functools.partial(_qfe_kernel, eps=LN_EPS),
        out_shape=jax.ShapeDtypeStruct((B, 1, QE_DIM), f32),
        grid=(B,),
        in_specs=[_batched_spec(lw), _batched_spec(qs3)] + [_shared_spec(a) for a in shared],
        out_specs=pl.BlockSpec((1, 1, QE_DIM), lambda b: (b, 0, 0)),
        compiler_params=pltpu.CompilerParams(dimension_semantics=("parallel",)),
    )(lw, qs3, *shared)


def prompt_pool_forward(pp, qs_np):
    B = qs_np.shape[0]
    f32 = jnp.float32
    mean_q = float(np.asarray(qs_np, np.float32).mean())
    sim_scale = 1.0 + PROMPT_BETA * mean_q
    E = pp['qp2_w'].shape[1]
    Eh = pp['qp1_w'].shape[1]
    qs3 = jnp.asarray(qs_np, f32).reshape(B, 1, 1)
    shared = [pp['qp1_w'].reshape(1, Eh).astype(f32),
              pp['qp1_b'].reshape(1, Eh).astype(f32),
              pp['qp_ln_g'].reshape(1, Eh).astype(f32),
              pp['qp_ln_b'].reshape(1, Eh).astype(f32),
              pp['qp2_w'].astype(f32),
              pp['qp2_b'].reshape(1, E).astype(f32),
              jnp.asarray(pp['keys'], f32).T]
    weights = pl.pallas_call(
        functools.partial(_prompt_weights_kernel, eps=LN_EPS, sim_scale=sim_scale),
        out_shape=jax.ShapeDtypeStruct((B, 1, POOL_SIZE), f32),
        grid=(B,),
        in_specs=[_batched_spec(qs3)] + [_shared_spec(a) for a in shared],
        out_specs=pl.BlockSpec((1, 1, POOL_SIZE), lambda b: (b, 0, 0)),
        compiler_params=pltpu.CompilerParams(dimension_semantics=("parallel",)),
    )(qs3, *shared)[:, 0, :]

    topw, topi = jax.lax.top_k(weights, TOP_K)                 # on-device, no host sync
    sel = jnp.take(jnp.asarray(pp['embeddings'], f32), topi, axis=0)
    mask = np.zeros((B, LEN_MAX, 1), np.float32)
    for b in range(B):
        mu = float(np.asarray(qs_np[b:b + 1], np.float32).mean())
        length = LEN_MIN + (LEN_MAX - LEN_MIN) * (1 - mu / 5)
        length = max(LEN_MIN, min(LEN_MAX, int(length)))
        mask[b, :length, 0] = 1.0
    prompt_e = jnp.sum(sel * topw[:, :, None, None], axis=1) * jnp.asarray(mask)
    return prompt_e


def conv3x3_in(pc, x_slab, H):
    B = x_slab.shape[0]
    WCout = pc['w'].shape[-1]
    return pl.pallas_call(
        functools.partial(_intro_kernel, H=H, C=pc['C']),
        out_shape=jax.ShapeDtypeStruct((B, H, WCout), STORE_DTYPE),
        grid=(B,),
        in_specs=[_batched_spec(x_slab), _shared_spec(pc['w']), _shared_spec(pc['b'])],
        out_specs=pl.BlockSpec((1, H, WCout), lambda b: (b, 0, 0)),
        compiler_params=pltpu.CompilerParams(dimension_semantics=("parallel",)),
    )(x_slab, pc['w'], pc['b'])


def conv3x3_out(pc, x, x0, H):
    B = x.shape[0]
    WCout = pc['w'].shape[-1]
    return pl.pallas_call(
        functools.partial(_ending_kernel, H=H, C=pc['C']),
        out_shape=jax.ShapeDtypeStruct((B, H, WCout), jnp.float32),
        grid=(B,),
        in_specs=[_batched_spec(x), _batched_spec(x0),
                  _shared_spec(pc['w']), _shared_spec(pc['b'])],
        out_specs=pl.BlockSpec((1, H, WCout), lambda b: (b, 0, 0)),
        compiler_params=pltpu.CompilerParams(dimension_semantics=("parallel",)),
    )(x, x0, pc['w'], pc['b'])


def fused_naf_block(bp, x, tg):
    B, H, WC = x.shape
    args = [x, tg, bp['tmod_w'], bp['lnp'], bp['c1'], bp['dw'], bp['sca'],
            bp['c3'], bp['c4'], bp['c5'], bp['vecs'], bp['bias']]
    return pl.pallas_call(
        functools.partial(_naf_block_kernel, H=H, C=bp['C'], WC=WC, eps=LN_EPS),
        out_shape=jax.ShapeDtypeStruct((B, H, WC), x.dtype),
        grid=(B,),
        in_specs=[_batched_spec(x), _batched_spec(tg)]
                 + [_shared_spec(a) for a in args[2:]],
        out_specs=pl.BlockSpec((1, H, WC), lambda b: (b, 0, 0)),
        compiler_params=pltpu.CompilerParams(dimension_semantics=("parallel",)),
    )(*args)


def fused_enh_down(pe, x, qemb):
    B, H, WC = x.shape
    args = [x, qemb, pe['wp'], pe['w3'], pe['c1'], pe['m'], pe['s'], pe['bias']]
    out_shape = (jax.ShapeDtypeStruct((B, H, WC), x.dtype),
                 jax.ShapeDtypeStruct((B, H // 2, WC), x.dtype))
    return pl.pallas_call(
        functools.partial(_enh_down_kernel, H=H, C=pe['C'], WC=WC),
        out_shape=out_shape,
        grid=(B,),
        in_specs=[_batched_spec(x), _batched_spec(qemb)]
                 + [_shared_spec(a) for a in args[2:]],
        out_specs=(pl.BlockSpec((1, H, WC), lambda b: (b, 0, 0)),
                   pl.BlockSpec((1, H // 2, WC), lambda b: (b, 0, 0))),
        compiler_params=pltpu.CompilerParams(dimension_semantics=("parallel",)),
    )(*args)


def fused_up_skip(pu, x, skip):
    B, h, WC = x.shape
    return pl.pallas_call(
        _up_skip_kernel,
        out_shape=jax.ShapeDtypeStruct((B, 2 * h, WC), x.dtype),
        grid=(B,),
        in_specs=[_batched_spec(x), _batched_spec(skip),
                  _shared_spec(pu['U']), _shared_spec(pu['T'])],
        out_specs=pl.BlockSpec((1, 2 * h, WC), lambda b: (b, 0, 0)),
        compiler_params=pltpu.CompilerParams(dimension_semantics=("parallel",)),
    )(x, skip, pu['U'], pu['T'])


def fused_cross_attention(ap, x_ld, guidance, H, W):
    B = x_ld.shape[0]
    f32 = jnp.float32
    C = ap['q_w'].shape[0]
    h, d = NUM_HEADS, C // NUM_HEADS
    x_btc = x_ld.reshape(B, H * W, C)          # pure reshape (lane layout preserved)
    # kv projection + per-head block-diagonal K/V layout (tiny tensors; XLA glue).
    kv = jnp.einsum('ble,ef->blf', guidance.astype(f32), ap['kv_w'].astype(f32)) \
        + ap['kv_b'].astype(f32)
    kv = kv.reshape(B, -1, 2, h, d)
    k = jnp.transpose(kv[:, :, 0], (0, 2, 1, 3))
    v = jnp.transpose(kv[:, :, 1], (0, 2, 1, 3))
    Lh = k.shape[2]
    eye = jnp.eye(h, dtype=f32)
    k_blk = jnp.einsum('bhld,hg->bhdgl', k, eye).reshape(B, C, h * Lh)
    v_blk = jnp.einsum('bhld,hg->bhlgd', v, eye).reshape(B, h * Lh, C)
    qw = ap['q_w'].astype(f32)
    qb = ap['q_b'].reshape(1, C).astype(f32)
    pw = ap['proj_w'].astype(f32)
    pb = ap['proj_b'].reshape(1, C).astype(f32)
    out = pl.pallas_call(
        functools.partial(_cross_attn_kernel, num_heads=h, scale=d ** -0.5),
        out_shape=jax.ShapeDtypeStruct((B, H * W, C), x_ld.dtype),
        grid=(B,),
        in_specs=[_batched_spec(x_btc), _batched_spec(k_blk), _batched_spec(v_blk),
                  _shared_spec(qw), _shared_spec(qb), _shared_spec(pw), _shared_spec(pb)],
        out_specs=pl.BlockSpec((1, H * W, C), lambda b: (b, 0, 0)),
        compiler_params=pltpu.CompilerParams(dimension_semantics=("parallel",)),
    )(x_btc, k_blk, v_blk, qw, qb, pw, pb)
    return out.reshape(B, H, W * C)


# =============================== JAX glue helpers ==============================

def timestep_embedding(timesteps, dim):
    # diffusers Timesteps(dim, flip_sin_to_cos=True, downscale_freq_shift=0.0)
    half = dim // 2
    exponent = -math.log(10000.0) * jnp.arange(half, dtype=jnp.float32) / half
    freqs = jnp.exp(exponent)
    emb = timesteps.astype(jnp.float32)[:, None] * freqs[None, :]
    emb = jnp.concatenate([jnp.sin(emb), jnp.cos(emb)], axis=-1)
    emb = jnp.concatenate([emb[:, half:], emb[:, :half]], axis=-1)
    return emb


# =============================== full forward pass =============================

def nafnet_forward(params, prep, inp_nchw, time_val, quality_score_np):
    qs_np = np.asarray(quality_score_np, np.float32)
    B = inp_nchw.shape[0]
    inp = jnp.transpose(inp_nchw, (0, 2, 3, 1)).astype(jnp.float32)   # NHWC
    _, H0, W0, _ = inp.shape

    ts = jnp.full((B,), float(int(time_val)), jnp.float32)
    tg = time_mlp_forward(params, timestep_embedding(ts, WIDTH))      # (B, 1, 16)

    # check_image_size + channel pad -> lane-dense (B, H, W*CIN_PAD) slab
    ps = 2 ** len(ENC_BLKS)
    ph = (ps - H0 % ps) % ps
    pw_ = (ps - W0 % ps) % ps
    x_img = jnp.pad(inp, ((0, 0), (0, ph), (0, pw_), (0, CIN_PAD - IMG_CH)))
    Hc, Wc = H0 + ph, W0 + pw_
    x_slab = x_img.reshape(B, Hc, Wc * CIN_PAD).astype(STORE_DTYPE)

    x = conv3x3_in(prep['intro'], x_slab, Hc)                         # (B, Hc, 128)
    enc0 = x

    qemb = quality_feature_extractor(params['qfe'], qs_np)            # (B, 1, 768)
    prompt_e = prompt_pool_forward(params['prompt'], qs_np)           # (B, 64, E)

    skips = []
    for st in prep['enc']:
        for bp in st['blocks']:
            x = fused_naf_block(bp, x, tg)
        x, xd = fused_enh_down(st['enh'], x, qemb)                    # enhance + down
        skips.append(x)
        x = xd

    for bp in prep['mid']['blocks']:
        x = fused_naf_block(bp, x, tg)

    x = fused_cross_attention(params['atten0'], x, prompt_e,
                              prep['mid']['H'], prep['mid']['W'])
    prompt_loss = jnp.float32(0.0)

    for s, st in enumerate(prep['dec']):
        skip = skips[len(skips) - 1 - s]
        x = fused_up_skip(st['up'], x, skip)                          # up + shuffle + skip
        for bp in st['blocks']:
            x = fused_naf_block(bp, x, tg)

    out = conv3x3_out(prep['ending'], x, enc0, Hc)                    # fused `x + encs[0]`
    out = out.reshape(B, Hc, Wc, WIDTH)[:, :H0, :W0, :OUT_CH]
    out_nchw = jnp.transpose(out, (0, 3, 1, 2))
    orig = inp_nchw[:, :IMG_CH // 2].astype(jnp.float32)
    return jnp.concatenate([orig, out_nchw], axis=1), prompt_loss


# ============================ deterministic parameters =========================

_KEY = [jax.random.PRNGKey(42)]


def _nk():
    _KEY[0], k = jax.random.split(_KEY[0])
    return k


def init_w(shape, scale=0.05):
    return jax.random.normal(_nk(), shape, jnp.float32) * scale


def naf_params(c):
    return dict(
        mlp_w=init_w((TIME_DIM // 2, 4 * c)), mlp_b=init_w((4 * c,)),
        c1_w=init_w((c, 2 * c)), c1_b=init_w((2 * c,)),
        c2_w=init_w((3, 3, 2 * c)), c2_b=init_w((2 * c,)),
        c3_w=init_w((c, c)), c3_b=init_w((c,)),
        sca_w=init_w((c, c)), sca_b=init_w((c,)),
        c4_w=init_w((c, 2 * c)), c4_b=init_w((2 * c,)),
        c5_w=init_w((c, c)), c5_b=init_w((c,)),
        n1_g=jnp.ones((c,), jnp.float32), n1_b=jnp.zeros((c,), jnp.float32),
        n2_g=jnp.ones((c,), jnp.float32), n2_b=jnp.zeros((c,), jnp.float32),
        beta=jnp.zeros((c,), jnp.float32), gamma=jnp.zeros((c,), jnp.float32),
    )


def init_params():
    p = {}
    p['time_lin1_w'] = init_w((WIDTH, 2 * TIME_DIM))
    p['time_lin1_b'] = init_w((2 * TIME_DIM,))
    p['time_lin2_w'] = init_w((TIME_DIM, TIME_DIM))
    p['time_lin2_b'] = init_w((TIME_DIM,))
    p['intro_w'] = init_w((9, IMG_CH, WIDTH))
    p['intro_b'] = init_w((WIDTH,))
    p['ending_w'] = init_w((9, WIDTH, OUT_CH))
    p['ending_b'] = init_w((OUT_CH,))

    chan = WIDTH
    p['enc'] = []
    for num in ENC_BLKS:
        stage = dict(
            blocks=[naf_params(chan) for _ in range(num)],
            down_w=init_w((2, 2, chan, 2 * chan)), down_b=init_w((2 * chan,)),
            enh=dict(w3=init_w((9, chan, chan)), b3=init_w((chan,)),
                     c1_w=init_w((chan, chan)), c1_b=init_w((chan,)),
                     wp_w=init_w((QE_DIM, chan)), wp_b=init_w((chan,))),
        )
        p['enc'].append(stage)
        chan *= 2

    p['mid'] = [naf_params(chan) for _ in range(MID_BLKS)]

    E = chan
    p['prompt'] = dict(
        keys=init_w((POOL_SIZE, E), 0.2),
        embeddings=init_w((POOL_SIZE, LEN_MAX, E), 0.2),
        qp1_w=init_w((1, E // 2)), qp1_b=init_w((E // 2,)),
        qp_ln_g=jnp.ones((E // 2,), jnp.float32), qp_ln_b=jnp.zeros((E // 2,), jnp.float32),
        qp2_w=init_w((E // 2, E)), qp2_b=init_w((E,)),
    )
    p['atten0'] = dict(
        q_w=init_w((E, E)), q_b=init_w((E,)),
        kv_w=init_w((E, 2 * E // NUM_HEADS)), kv_b=init_w((2 * E // NUM_HEADS,)),
        proj_w=init_w((E, E)), proj_b=init_w((E,)),
    )

    p['dec'] = []
    for num in DEC_BLKS:
        stage = dict(up_w=init_w((chan, 2 * chan)),
                     blocks=[naf_params(chan // 2) for _ in range(num)])
        chan //= 2
        p['dec'].append(stage)

    p['qfe'] = dict(
        level_emb=init_w((5, QE_DIM), 0.02),
        lp1_w=init_w((1, 64)), lp1_b=init_w((64,)),
        lp_ln_g=jnp.ones((64,), jnp.float32), lp_ln_b=jnp.zeros((64,), jnp.float32),
        lp2_w=init_w((64, QE_DIM)), lp2_b=init_w((QE_DIM,)),
    )
    return p


# ==================================== main =====================================

if __name__ == "__main__":
    key = jax.random.PRNGKey(0)
    k1, k2 = jax.random.split(key)
    B, H, W = 2, 16, 16
    inp = jax.random.normal(k1, (B, IMG_CH, H, W), jnp.float32)
    quality_score = np.asarray(
        jax.random.uniform(k2, (B, 1), jnp.float32, 1.5, 4.5))

    params = init_params()
    prep = prepare_params(params, H, W)        # derived weight layouts, built once

    out, prompt_loss = nafnet_forward(params, prep, inp, 1.0, quality_score)
    out = jax.block_until_ready(out)
    prompt_loss = jax.block_until_ready(prompt_loss)

    assert out.shape == (B, IMG_CH, H, W), out.shape
    assert bool(jnp.all(jnp.isfinite(out)))
    print("KERNEL_OK")
</pallas_src>

<mosaic_0001>
module attributes {stable_mosaic.version = 11 : i64} {
  func.func @_time_mlp_kernel(%arg0: i32, %arg1: memref<2x8xf32, #tpu.memory_space<vmem>>, %arg2: memref<8x32xf32, #tpu.memory_space<vmem>>, %arg3: memref<1x32xf32, #tpu.memory_space<vmem>>, %arg4: memref<8x32xf32, #tpu.memory_space<vmem>>, %arg5: memref<1x32xf32, #tpu.memory_space<vmem>>, %arg6: memref<32x16xf32, #tpu.memory_space<vmem>>, %arg7: memref<1x16xf32, #tpu.memory_space<vmem>>, %arg8: memref<32x16xf32, #tpu.memory_space<vmem>>, %arg9: memref<1x16xf32, #tpu.memory_space<vmem>>, %arg10: memref<2x16xf32, #tpu.memory_space<vmem>>) attributes {dimension_semantics = [#tpu.dimension_semantics<arbitrary>], iteration_bounds = array<i64: 1>, scalar_prefetch = 0 : i64, scratch_operands = 0 : i64, tpu.core_type = #tpu.core_type<tc>, window_params = [{pipeline_mode = #tpu.pipeline_mode<synchronous>, transform_indices = @transform_0, window_bounds = array<i64: 2, 8>}, {pipeline_mode = #tpu.pipeline_mode<synchronous>, transform_indices = @transform_1, window_bounds = array<i64: 8, 32>}, {pipeline_mode = #tpu.pipeline_mode<synchronous>, transform_indices = @transform_2, window_bounds = array<i64: 1, 32>}, {pipeline_mode = #tpu.pipeline_mode<synchronous>, transform_indices = @transform_3, window_bounds = array<i64: 8, 32>}, {pipeline_mode = #tpu.pipeline_mode<synchronous>, transform_indices = @transform_4, window_bounds = array<i64: 1, 32>}, {pipeline_mode = #tpu.pipeline_mode<synchronous>, transform_indices = @transform_5, window_bounds = array<i64: 32, 16>}, {pipeline_mode = #tpu.pipeline_mode<synchronous>, transform_indices = @transform_6, window_bounds = array<i64: 1, 16>}, {pipeline_mode = #tpu.pipeline_mode<synchronous>, transform_indices = @transform_7, window_bounds = array<i64: 32, 16>}, {pipeline_mode = #tpu.pipeline_mode<synchronous>, transform_indices = @transform_8, window_bounds = array<i64: 1, 16>}, {pipeline_mode = #tpu.pipeline_mode<synchronous>, transform_indices = @transform_9, window_bounds = array<i64: 2, 16>}]} {
    %c0 = arith.constant 0 : index
    %c0_0 = arith.constant 0 : index
    %0 = vector.load %arg1[%c0, %c0_0] : memref<2x8xf32, #tpu.memory_space<vmem>>, vector<2x8xf32>
    %c0_1 = arith.constant 0 : index
    %c0_2 = arith.constant 0 : index
    %1 = vector.load %arg2[%c0_1, %c0_2] : memref<8x32xf32, #tpu.memory_space<vmem>>, vector<8x32xf32>
    %cst = arith.constant dense<0.000000e+00> : vector<2x32xf32>
    %2 = tpu.matmul %0, %1, %cst {dimension_numbers = #tpu.dot_dimension_numbers<[1], [0], [0], [1], [0, 0, 1, 1], [], []>} : vector<2x8xf32>, vector<8x32xf32>, vector<2x32xf32> -> vector<2x32xf32>
    %c0_3 = arith.constant 0 : index
    %c0_4 = arith.constant 0 : index
    %3 = vector.load %arg3[%c0_3, %c0_4] : memref<1x32xf32, #tpu.memory_space<vmem>>, vector<1x32xf32>
    %4 = vector.broadcast %3 : vector<1x32xf32> to vector<2x32xf32>
    %5 = arith.addf %2, %4 : vector<2x32xf32>
    %c0_5 = arith.constant 0 : index
    %c0_6 = arith.constant 0 : index
    %6 = vector.load %arg4[%c0_5, %c0_6] : memref<8x32xf32, #tpu.memory_space<vmem>>, vector<8x32xf32>
    %cst_7 = arith.constant dense<0.000000e+00> : vector<2x32xf32>
    %7 = tpu.matmul %0, %6, %cst_7 {dimension_numbers = #tpu.dot_dimension_numbers<[1], [0], [0], [1], [0, 0, 1, 1], [], []>} : vector<2x8xf32>, vector<8x32xf32>, vector<2x32xf32> -> vector<2x32xf32>
    %c0_8 = arith.constant 0 : index
    %c0_9 = arith.constant 0 : index
    %8 = vector.load %arg5[%c0_8, %c0_9] : memref<1x32xf32, #tpu.memory_space<vmem>>, vector<1x32xf32>
    %9 = vector.broadcast %8 : vector<1x32xf32> to vector<2x32xf32>
    %10 = arith.addf %7, %9 : vector<2x32xf32>
    %11 = arith.mulf %5, %10 : vector<2x32xf32>
    %c0_10 = arith.constant 0 : index
    %c0_11 = arith.constant 0 : index
    %12 = vector.load %arg6[%c0_10, %c0_11] : memref<32x16xf32, #tpu.memory_space<vmem>>, vector<32x16xf32>
    %cst_12 = arith.constant dense<0.000000e+00> : vector<2x16xf32>
    %13 = tpu.matmul %11, %12, %cst_12 {dimension_numbers = #tpu.dot_dimension_numbers<[1], [0], [0], [1], [0, 0, 1, 1], [], []>} : vector<2x32xf32>, vector<32x16xf32>, vector<2x16xf32> -> vector<2x16xf32>
    %c0_13 = arith.constant 0 : index
    %c0_14 = arith.constant 0 : index
    %14 = vector.load %arg7[%c0_13, %c0_14] : memref<1x16xf32, #tpu.memory_space<vmem>>, vector<1x16xf32>
    %15 = vector.broadcast %14 : vector<1x16xf32> to vector<2x16xf32>
    %16 = arith.addf %13, %15 : vector<2x16xf32>
    %c0_15 = arith.constant 0 : index
    %c0_16 = arith.constant 0 : index
    %17 = vector.load %arg8[%c0_15, %c0_16] : memref<32x16xf32, #tpu.memory_space<vmem>>, vector<32x16xf32>
    %cst_17 = arith.constant dense<0.000000e+00> : vector<2x16xf32>
    %18 = tpu.matmul %11, %17, %cst_17 {dimension_numbers = #tpu.dot_dimension_numbers<[1], [0], [0], [1], [0, 0, 1, 1], [], []>} : vector<2x32xf32>, vector<32x16xf32>, vector<2x16xf32> -> vector<2x16xf32>
    %c0_18 = arith.constant 0 : index
    %c0_19 = arith.constant 0 : index
    %19 = vector.load %arg9[%c0_18, %c0_19] : memref<1x16xf32, #tpu.memory_space<vmem>>, vector<1x16xf32>
    %20 = vector.broadcast %19 : vector<1x16xf32> to vector<2x16xf32>
    %21 = arith.addf %18, %20 : vector<2x16xf32>
    %22 = arith.mulf %16, %21 : vector<2x16xf32>
    %c0_20 = arith.constant 0 : index
    %c0_21 = arith.constant 0 : index
    %23 = vector.load %arg10[%c0_20, %c0_21] : memref<2x16xf32, #tpu.memory_space<vmem>>, vector<2x16xf32>
    tpu.vector_store %arg10[%c0_20, %c0_21], %22 {strides = array<i32>} : memref<2x16xf32, #tpu.memory_space<vmem>>, vector<2x16xf32>,
    return
  }
  func.func @transform_0(%arg0: i32) -> (i32, i32) {
    %c0_i32 = arith.constant 0 : i32
    %c0_i32_0 = arith.constant 0 : i32
    %c0_i32_1 = arith.constant 0 : i32
    return %c0_i32, %c0_i32_0 : i32, i32
  }
  func.func @transform_1(%arg0: i32) -> (i32, i32) {
    %c0_i32 = arith.constant 0 : i32
    %c0_i32_0 = arith.constant 0 : i32
    %c0_i32_1 = arith.constant 0 : i32
    return %c0_i32, %c0_i32_0 : i32, i32
  }
  func.func @transform_2(%arg0: i32) -> (i32, i32) {
    %c0_i32 = arith.constant 0 : i32
    %c0_i32_0 = arith.constant 0 : i32
    %c0_i32_1 = arith.constant 0 : i32
    return %c0_i32, %c0_i32_0 : i32, i32
  }
  func.func @transform_3(%arg0: i32) -> (i32, i32) {
    %c0_i32 = arith.constant 0 : i32
    %c0_i32_0 = arith.constant 0 : i32
    %c0_i32_1 = arith.constant 0 : i32
    return %c0_i32, %c0_i32_0 : i32, i32
  }
  func.func @transform_4(%arg0: i32) -> (i32, i32) {
    %c0_i32 = arith.constant 0 : i32
    %c0_i32_0 = arith.constant 0 : i32
    %c0_i32_1 = arith.constant 0 : i32
    return %c0_i32, %c0_i32_0 : i32, i32
  }
  func.func @transform_5(%arg0: i32) -> (i32, i32) {
    %c0_i32 = arith.constant 0 : i32
    %c0_i32_0 = arith.constant 0 : i32
    %c0_i32_1 = arith.constant 0 : i32
    return %c0_i32, %c0_i32_0 : i32, i32
  }
  func.func @transform_6(%arg0: i32) -> (i32, i32) {
    %c0_i32 = arith.constant 0 : i32
    %c0_i32_0 = arith.constant 0 : i32
    %c0_i32_1 = arith.constant 0 : i32
    return %c0_i32, %c0_i32_0 : i32, i32
  }
  func.func @transform_7(%arg0: i32) -> (i32, i32) {
    %c0_i32 = arith.constant 0 : i32
    %c0_i32_0 = arith.constant 0 : i32
    %c0_i32_1 = arith.constant 0 : i32
    return %c0_i32, %c0_i32_0 : i32, i32
  }
  func.func @transform_8(%arg0: i32) -> (i32, i32) {
    %c0_i32 = arith.constant 0 : i32
    %c0_i32_0 = arith.constant 0 : i32
    %c0_i32_1 = arith.constant 0 : i32
    return %c0_i32, %c0_i32_0 : i32, i32
  }
  func.func @transform_9(%arg0: i32) -> (i32, i32) {
    %c0_i32 = arith.constant 0 : i32
    %c0_i32_0 = arith.constant 0 : i32
    %c0_i32_1 = arith.constant 0 : i32
    return %c0_i32, %c0_i32_0 : i32, i32
  }
}

</mosaic_0001>

<llo_original>
// kernel: tpu_custom_call.1
$region0: #{tpu_custom_call.1}
  #allocation0 [shape = 'u32[]', space=smem, size = 0x4, offset = 0x4, fixed_abs, tag = 'smem constant byte address 0x4 - core index']
  #allocation1 [shape = 'u32[144,128]{1,0:T(1,128)}', space=vmem, size = 0x12000, scoped, tag = 'internal scratch']
  %s0 = inlined_call_operand.vmem [shape: f32[2,8], index: 0, kind: input, shape index: {}]
  %s1 = inlined_call_operand.vmem [shape: f32[8,32], index: 1, kind: input, shape index: {}]
  %s2 = inlined_call_operand.vmem [shape: f32[1,32], index: 2, kind: input, shape index: {}]
  %s3 = inlined_call_operand.vmem [shape: f32[8,32], index: 3, kind: input, shape index: {}]
  %s4 = inlined_call_operand.vmem [shape: f32[1,32], index: 4, kind: input, shape index: {}]
  %s5 = inlined_call_operand.vmem [shape: f32[32,16], index: 5, kind: input, shape index: {}]
  %s6 = inlined_call_operand.vmem [shape: f32[1,16], index: 6, kind: input, shape index: {}]
  %s7 = inlined_call_operand.vmem [shape: f32[32,16], index: 7, kind: input, shape index: {}]
  %s8 = inlined_call_operand.vmem [shape: f32[1,16], index: 8, kind: input, shape index: {}]
  %s9 = inlined_call_operand.hbm [shape: f32[2,16], index: 9, kind: output, shape index: {}]
  %s10 = sld [smem:[#allocation0]]
  $region46: #{tpu_custom_call.1} parent=0
    _
  %s12 = ssub.s32 1, %s10
  %s13 = scalar_select 0, %s12, %s10
  $region1: #{tpu_custom_call.1} parent=0
    #allocation2 [shape = 'u8[1024]{0}', space=vmem, size = 0x400, scoped, tag = 'output window, operand 0, single buffered']
    #allocation3 [shape = 's32[1]{0}', space=sflag, size = 0x4, scoped, tag = 'scoped memory for tpu_custom_call.1']
    %14 = vsyncpa [#allocation3], 0
    // Predicated region
    $region2: #{tpu_custom_call.1} parent=1 // pred_check
      _
    $region3: #{tpu_custom_call.1} parent=1 // pred_check_branch
      %16 = sbr.rel (0) target = $region5
    $region4: #{tpu_custom_call.1} parent=1 // pred_region
      _
    $region5: #{tpu_custom_call.1} parent=1 // pred_fallthru
      _
    // Predicated region
    $region6: #{tpu_custom_call.1} parent=1 // pred_check
      _
    $region7: #{tpu_custom_call.1} parent=1 // pred_check_branch
      %18 = sbr.rel (0) target = $region9
    $region8: #{tpu_custom_call.1} parent=1 // pred_region
      _
    $region9: #{tpu_custom_call.1} parent=1 // pred_fallthru
      _
    // Predicated region
    $region10: #{tpu_custom_call.1} parent=1 // pred_check
      _
    $region11: #{tpu_custom_call.1} parent=1 // pred_check_branch
      %20 = sbr.rel (0) target = $region13
    $region12: #{tpu_custom_call.1} parent=1 // pred_region
      _
    $region13: #{tpu_custom_call.1} parent=1 // pred_fallthru
      _
    // Predicated region
    $region14: #{tpu_custom_call.1} parent=1 // pred_check
      _
    $region15: #{tpu_custom_call.1} parent=1 // pred_check_branch
      %22 = sbr.rel (0) target = $region17
    $region16: #{tpu_custom_call.1} parent=1 // pred_region
      _
    $region17: #{tpu_custom_call.1} parent=1 // pred_fallthru
      _
    // Predicated region
    $region18: #{tpu_custom_call.1} parent=1 // pred_check
      _
    $region19: #{tpu_custom_call.1} parent=1 // pred_check_branch
      %24 = sbr.rel (0) target = $region21
    $region20: #{tpu_custom_call.1} parent=1 // pred_region
      _
    $region21: #{tpu_custom_call.1} parent=1 // pred_fallthru
      _
    // Predicated region
    $region22: #{tpu_custom_call.1} parent=1 // pred_check
      _
    $region23: #{tpu_custom_call.1} parent=1 // pred_check_branch
      %26 = sbr.rel (0) target = $region25
    $region24: #{tpu_custom_call.1} parent=1 // pred_region
      _
    $region25: #{tpu_custom_call.1} parent=1 // pred_fallthru
      _
    // Predicated region
    $region26: #{tpu_custom_call.1} parent=1 // pred_check
      _
    $region27: #{tpu_custom_call.1} parent=1 // pred_check_branch
      %28 = sbr.rel (0) target = $region29
    $region28: #{tpu_custom_call.1} parent=1 // pred_region
      _
    $region29: #{tpu_custom_call.1} parent=1 // pred_fallthru
      _
    // Predicated region
    $region30: #{tpu_custom_call.1} parent=1 // pred_check
      _
    $region31: #{tpu_custom_call.1} parent=1 // pred_check_branch
      %30 = sbr.rel (0) target = $region33
    $region32: #{tpu_custom_call.1} parent=1 // pred_region
      _
    $region33: #{tpu_custom_call.1} parent=1 // pred_fallthru
      _
    // Predicated region
    $region34: #{tpu_custom_call.1} parent=1 // pred_check
      _
    $region35: #{tpu_custom_call.1} parent=1 // pred_check_branch
      %32 = sbr.rel (0) target = $region37
    $region36: #{tpu_custom_call.1} parent=1 // pred_region
      _
    $region37: #{tpu_custom_call.1} parent=1 // pred_fallthru
      _
    %v33 = vld [vmem:[%s0] sm:$0x3]
    %v34 = vld [vmem:[%s1] sm:$0xff]
    %v35 = vld [vmem:[%s2] sm:$0x1]
    %v37 = vlaneseq
    %v38 = vshrl.u32 %v37, 7
    %v39 = vsub.s32 0, %v38
    %v40 = vrot.slane %v35, %v39
    %vm42 = vcmask 64512
    %v44 = vsel %vm42, %v33, 0
    %46 = vmatprep.subr.mxu0 0.0
    %47 = vmatpush1.msra.mxu0 %v34
    %48 = vmatprep.subr.mxu0 0.0
    %49 = vmatpush1.msra.mxu0 0.0
    %50 = vmatprep.subr.mxu0 0.0
    %51 = vmatpush1.msra.mxu0 0.0
    %52 = vmatprep.subr.mxu0 0.0
    %53 = vmatpush1.msra.mxu0 0.0
    %54 = vmatprep.subr.mxu0 0.0
    %55 = vmatpush1.msra.mxu0 0.0
    %56 = vmatprep.subr.mxu0 0.0
    %57 = vmatpush1.msra.mxu0 0.0
    %58 = vmatprep.subr.mxu0 0.0
    %59 = vmatpush1.msra.mxu0 0.0
    %60 = vmatprep.subr.mxu0 0.0
    %61 = vmatpush1.msra.mxu0 0.0
    %62 = vmatprep.subr.mxu0 0.0
    %63 = vmatpush1.msra.mxu0 0.0
    %64 = vmatprep.subr.mxu0 0.0
    %65 = vmatpush1.msra.mxu0 0.0
    %66 = vmatprep.subr.mxu0 0.0
    %67 = vmatpush1.msra.mxu0 0.0
    %68 = vmatprep.subr.mxu0 0.0
    %69 = vmatpush1.msra.mxu0 0.0
    %70 = vmatprep.subr.mxu0 0.0
    %71 = vmatpush1.msra.mxu0 0.0
    %72 = vmatprep.subr.mxu0 0.0
    %73 = vmatpush1.msra.mxu0 0.0
    %74 = vmatprep.subr.mxu0 0.0
    %75 = vmatpush1.msra.mxu0 0.0
    %76 = vmatprep.subr.mxu0 0.0
    %77 = vmatpush1.msra.mxu0 0.0
    %78 = vmatprep.subr.mxu0 0.0
    %79 = vmatpush1.msra.mxu0 0.0
    %80 = vmatprep.subr.mxu0 0.0
    %81 = vmatpush1.msra.mxu0 0.0
    %82 = vmatprep.subr.mxu0 0.0
    %83 = vmatpush1.msra.mxu0 0.0
    %84 = vmatprep.subr.mxu0 0.0
    %85 = vmatpush1.msra.mxu0 0.0
    %86 = vmatprep.subr.mxu0 0.0
    %87 = vmatpush1.msra.mxu0 0.0
    %88 = vmatprep.subr.mxu0 0.0
    %89 = vmatpush1.msra.mxu0 0.0
    %90 = vmatprep.subr.mxu0 0.0
    %91 = vmatpush1.msra.mxu0 0.0
    %92 = vmatprep.subr.mxu0 0.0
    %93 = vmatpush1.msra.mxu0 0.0
    %94 = vmatprep.subr.mxu0 0.0
    %95 = vmatpush1.msra.mxu0 0.0
    %96 = vmatprep.subr.mxu0 0.0
    %97 = vmatpush1.msra.mxu0 0.0
    %98 = vmatprep.subr.mxu0 0.0
    %99 = vmatpush1.msra.mxu0 0.0
    %100 = vmatprep.subr.mxu0 0.0
    %101 = vmatpush1.msra.mxu0 0.0
    %102 = vmatprep.subr.mxu0 0.0
    %103 = vmatpush1.msra.mxu0 0.0
    %104 = vmatprep.subr.mxu0 0.0
    %105 = vmatpush1.msra.mxu0 0.0
    %106 = vmatprep.subr.mxu0 0.0
    %107 = vmatpush1.msra.mxu0 0.0
    %108 = vmatprep.subr.mxu0 0.0
    %109 = vmatpush1.msra.mxu0 0.0
    %110 = vmatprep.mubr.f32.mxu0 0.0
    %111 = vmatmul.mubr.f32.gmra.mrb[0].mxu0 %v44
    %v112 = vpop.f32.mrb[0].mxu0
    %v113 = vadd.f32 %v40, %v112
    %v114 = vpop.f32.mrb[0].mxu0
    %115 = vdwg.mxu0
    %v116 = vld [vmem:[%s3] sm:$0xff]
    %v117 = vld [vmem:[%s4] sm:$0x1]
    %v119 = vlaneseq
    %v120 = vshrl.u32 %v119, 7
    %v121 = vsub.s32 0, %v120
    %v122 = vrot.slane %v117, %v121
    %124 = vmatprep.subr.mxu0 0.0
    %125 = vmatpush1.msra.mxu0 %v116
    %126 = vmatprep.subr.mxu0 0.0
    %127 = vmatpush1.msra.mxu0 0.0
    %128 = vmatprep.subr.mxu0 0.0
    %129 = vmatpush1.msra.mxu0 0.0
    %130 = vmatprep.subr.mxu0 0.0
    %131 = vmatpush1.msra.mxu0 0.0
    %132 = vmatprep.subr.mxu0 0.0
    %133 = vmatpush1.msra.mxu0 0.0
    %134 = vmatprep.subr.mxu0 0.0
    %135 = vmatpush1.msra.mxu0 0.0
    %136 = vmatprep.subr.mxu0 0.0
    %137 = vmatpush1.msra.mxu0 0.0
    %138 = vmatprep.subr.mxu0 0.0
    %139 = vmatpush1.msra.mxu0 0.0
    %140 = vmatprep.subr.mxu0 0.0
    %141 = vmatpush1.msra.mxu0 0.0
    %142 = vmatprep.subr.mxu0 0.0
    %143 = vmatpush1.msra.mxu0 0.0
    %144 = vmatprep.subr.mxu0 0.0
    %145 = vmatpush1.msra.mxu0 0.0
    %146 = vmatprep.subr.mxu0 0.0
    %147 = vmatpush1.msra.mxu0 0.0
    %148 = vmatprep.subr.mxu0 0.0
    %149 = vmatpush1.msra.mxu0 0.0
    %150 = vmatprep.subr.mxu0 0.0
    %151 = vmatpush1.msra.mxu0 0.0
    %152 = vmatprep.subr.mxu0 0.0
    %153 = vmatpush1.msra.mxu0 0.0
    %154 = vmatprep.subr.mxu0 0.0
    %155 = vmatpush1.msra.mxu0 0.0
    %156 = vmatprep.subr.mxu0 0.0
    %157 = vmatpush1.msra.mxu0 0.0
    %158 = vmatprep.subr.mxu0 0.0
    %159 = vmatpush1.msra.mxu0 0.0
    %160 = vmatprep.subr.mxu0 0.0
    %161 = vmatpush1.msra.mxu0 0.0
    %162 = vmatprep.subr.mxu0 0.0
    %163 = vmatpush1.msra.mxu0 0.0
    %164 = vmatprep.subr.mxu0 0.0
    %165 = vmatpush1.msra.mxu0 0.0
    %166 = vmatprep.subr.mxu0 0.0
    %167 = vmatpush1.msra.mxu0 0.0
    %168 = vmatprep.subr.mxu0 0.0
    %169 = vmatpush1.msra.mxu0 0.0
    %170 = vmatprep.subr.mxu0 0.0
    %171 = vmatpush1.msra.mxu0 0.0
    %172 = vmatprep.subr.mxu0 0.0
    %173 = vmatpush1.msra.mxu0 0.0
    %174 = vmatprep.subr.mxu0 0.0
    %175 = vmatpush1.msra.mxu0 0.0
    %176 = vmatprep.subr.mxu0 0.0
    %177 = vmatpush1.msra.mxu0 0.0
    %178 = vmatprep.subr.mxu0 0.0
    %179 = vmatpush1.msra.mxu0 0.0
    %180 = vmatprep.subr.mxu0 0.0
    %181 = vmatpush1.msra.mxu0 0.0
    %182 = vmatprep.subr.mxu0 0.0
    %183 = vmatpush1.msra.mxu0 0.0
    %184 = vmatprep.subr.mxu0 0.0
    %185 = vmatpush1.msra.mxu0 0.0
    %186 = vmatprep.subr.mxu0 0.0
    %187 = vmatpush1.msra.mxu0 0.0
    %188 = vmatprep.mubr.f32.mxu0 0.0
    %189 = vmatmul.mubr.f32.gmra.mrb[0].mxu0 %v44
    %v190 = vpop.f32.mrb[0].mxu0
    %v191 = vadd.f32 %v122, %v190
    %v192 = vpop.f32.mrb[0].mxu0
    %193 = vdwg.mxu0
    %v194 = vmul.f32 %v113, %v191
    %v195 = vld [vmem:[%s5] sm:$0xff]
    %v196 = vld [vmem:[%s5 + $0x8] sm:$0xff]
    %v197 = vld [vmem:[%s5 + $0x10] sm:$0xff]
    %v198 = vld [vmem:[%s5 + $0x18] sm:$0xff]
    %v199 = vld [vmem:[%s6] sm:$0x1]
    %v201 = vlaneseq
    %v202 = vshrl.u32 %v201, 7
    %v203 = vsub.s32 0, %v202
    %v204 = vrot.slane %v199, %v203
    %vm206 = vcmask 261120
    %v208 = vsel %vm206, %v194, 0
    %210 = vmatprep.subr.mxu0 0.0
    %211 = vmatpush1.msra.mxu0 %v195
    %212 = vmatprep.subr.mxu0 0.0
    %213 = vmatpush1.msra.mxu0 %v196
    %214 = vmatprep.subr.mxu0 0.0
    %215 = vmatpush1.msra.mxu0 %v197
    %216 = vmatprep.subr.mxu0 0.0
    %217 = vmatpush1.msra.mxu0 %v198
    %218 = vmatprep.subr.mxu0 0.0
    %219 = vmatpush1.msra.mxu0 0.0
    %220 = vmatprep.subr.mxu0 0.0
    %221 = vmatpush1.msra.mxu0 0.0
    %222 = vmatprep.subr.mxu0 0.0
    %223 = vmatpush1.msra.mxu0 0.0
    %224 = vmatprep.subr.mxu0 0.0
    %225 = vmatpush1.msra.mxu0 0.0
    %226 = vmatprep.subr.mxu0 0.0
    %227 = vmatpush1.msra.mxu0 0.0
    %228 = vmatprep.subr.mxu0 0.0
    %229 = vmatpush1.msra.mxu0 0.0
    %230 = vmatprep.subr.mxu0 0.0
    %231 = vmatpush1.msra.mxu0 0.0
    %232 = vmatprep.subr.mxu0 0.0
    %233 = vmatpush1.msra.mxu0 0.0
    %234 = vmatprep.subr.mxu0 0.0
    %235 = vmatpush1.msra.mxu0 0.0
    %236 = vmatprep.subr.mxu0 0.0
    %237 = vmatpush1.msra.mxu0 0.0
    %238 = vmatprep.subr.mxu0 0.0
    %239 = vmatpush1.msra.mxu0 0.0
    %240 = vmatprep.subr.mxu0 0.0
    %241 = vmatpush1.msra.mxu0 0.0
    %242 = vmatprep.subr.mxu0 0.0
    %243 = vmatpush1.msra.mxu0 0.0
    %244 = vmatprep.subr.mxu0 0.0
    %245 = vmatpush1.msra.mxu0 0.0
    %246 = vmatprep.subr.mxu0 0.0
    %247 = vmatpush1.msra.mxu0 0.0
    %248 = vmatprep.subr.mxu0 0.0
    %249 = vmatpush1.msra.mxu0 0.0
    %250 = vmatprep.subr.mxu0 0.0
    %251 = vmatpush1.msra.mxu0 0.0
    %252 = vmatprep.subr.mxu0 0.0
    %253 = vmatpush1.msra.mxu0 0.0
    %254 = vmatprep.subr.mxu0 0.0
    %255 = vmatpush1.msra.mxu0 0.0
    %256 = vmatprep.subr.mxu0 0.0
    %257 = vmatpush1.msra.mxu0 0.0
    %258 = vmatprep.subr.mxu0 0.0
    %259 = vmatpush1.msra.mxu0 0.0
    %260 = vmatprep.subr.mxu0 0.0
    %261 = vmatpush1.msra.mxu0 0.0
    %262 = vmatprep.subr.mxu0 0.0
    %263 = vmatpush1.msra.mxu0 0.0
    %264 = vmatprep.subr.mxu0 0.0
    %265 = vmatpush1.msra.mxu0 0.0
    %266 = vmatprep.subr.mxu0 0.0
    %267 = vmatpush1.msra.mxu0 0.0
    %268 = vmatprep.subr.mxu0 0.0
    %269 = vmatpush1.msra.mxu0 0.0
    %270 = vmatprep.subr.mxu0 0.0
    %271 = vmatpush1.msra.mxu0 0.0
    %272 = vmatprep.subr.mxu0 0.0
    %273 = vmatpush1.msra.mxu0 0.0
    %274 = vmatprep.mubr.f32.mxu0 0.0
    %275 = vmatmul.mubr.f32.gmra.mrb[0].mxu0 %v208
    %v276 = vpop.f32.mrb[0].mxu0
    %v277 = vadd.f32 %v204, %v276
    %v278 = vpop.f32.mrb[0].mxu0
    %279 = vdwg.mxu0
    %v280 = vld [vmem:[%s7] sm:$0xff]
    %v281 = vld [vmem:[%s7 + $0x8] sm:$0xff]
    %v282 = vld [vmem:[%s7 + $0x10] sm:$0xff]
    %v283 = vld [vmem:[%s7 + $0x18] sm:$0xff]
    %v284 = vld [vmem:[%s8] sm:$0x1]
    %v286 = vlaneseq
    %v287 = vshrl.u32 %v286, 7
    %v288 = vsub.s32 0, %v287
    %v289 = vrot.slane %v284, %v288
    %291 = vmatprep.subr.mxu0 0.0
    %292 = vmatpush1.msra.mxu0 %v280
    %293 = vmatprep.subr.mxu0 0.0
    %294 = vmatpush1.msra.mxu0 %v281
    %295 = vmatprep.subr.mxu0 0.0
    %296 = vmatpush1.msra.mxu0 %v282
    %297 = vmatprep.subr.mxu0 0.0
    %298 = vmatpush1.msra.mxu0 %v283
    %299 = vmatprep.subr.mxu0 0.0
    %300 = vmatpush1.msra.mxu0 0.0
    %301 = vmatprep.subr.mxu0 0.0
    %302 = vmatpush1.msra.mxu0 0.0
    %303 = vmatprep.subr.mxu0 0.0
    %304 = vmatpush1.msra.mxu0 0.0
    %305 = vmatprep.subr.mxu0 0.0
    %306 = vmatpush1.msra.mxu0 0.0
    %307 = vmatprep.subr.mxu0 0.0
    %308 = vmatpush1.msra.mxu0 0.0
    %309 = vmatprep.subr.mxu0 0.0
    %310 = vmatpush1.msra.mxu0 0.0
    %311 = vmatprep.subr.mxu0 0.0
    %312 = vmatpush1.msra.mxu0 0.0
    %313 = vmatprep.subr.mxu0 0.0
    %314 = vmatpush1.msra.mxu0 0.0
    %315 = vmatprep.subr.mxu0 0.0
    %316 = vmatpush1.msra.mxu0 0.0
    %317 = vmatprep.subr.mxu0 0.0
    %318 = vmatpush1.msra.mxu0 0.0
    %319 = vmatprep.subr.mxu0 0.0
    %320 = vmatpush1.msra.mxu0 0.0
    %321 = vmatprep.subr.mxu0 0.0
    %322 = vmatpush1.msra.mxu0 0.0
    %323 = vmatprep.subr.mxu0 0.0
    %324 = vmatpush1.msra.mxu0 0.0
    %325 = vmatprep.subr.mxu0 0.0
    %326 = vmatpush1.msra.mxu0 0.0
    %327 = vmatprep.subr.mxu0 0.0
    %328 = vmatpush1.msra.mxu0 0.0
    %329 = vmatprep.subr.mxu0 0.0
    %330 = vmatpush1.msra.mxu0 0.0
    %331 = vmatprep.subr.mxu0 0.0
    %332 = vmatpush1.msra.mxu0 0.0
    %333 = vmatprep.subr.mxu0 0.0
    %334 = vmatpush1.msra.mxu0 0.0
    %335 = vmatprep.subr.mxu0 0.0
    %336 = vmatpush1.msra.mxu0 0.0
    %337 = vmatprep.subr.mxu0 0.0
    %338 = vmatpush1.msra.mxu0 0.0
    %339 = vmatprep.subr.mxu0 0.0
    %340 = vmatpush1.msra.mxu0 0.0
    %341 = vmatprep.subr.mxu0 0.0
    %342 = vmatpush1.msra.mxu0 0.0
    %343 = vmatprep.subr.mxu0 0.0
    %344 = vmatpush1.msra.mxu0 0.0
    %345 = vmatprep.subr.mxu0 0.0
    %346 = vmatpush1.msra.mxu0 0.0
    %347 = vmatprep.subr.mxu0 0.0
    %348 = vmatpush1.msra.mxu0 0.0
    %349 = vmatprep.subr.mxu0 0.0
    %350 = vmatpush1.msra.mxu0 0.0
    %351 = vmatprep.subr.mxu0 0.0
    %352 = vmatpush1.msra.mxu0 0.0
    %353 = vmatprep.subr.mxu0 0.0
    %354 = vmatpush1.msra.mxu0 0.0
    %355 = vmatprep.mubr.f32.mxu0 0.0
    %356 = vmatmul.mubr.f32.gmra.mrb[0].mxu0 %v208
    %v357 = vpop.f32.mrb[0].mxu0
    %v358 = vadd.f32 %v289, %v357
    %v359 = vpop.f32.mrb[0].mxu0
    %360 = vdwg.mxu0
    %v361 = vmul.f32 %v277, %v358
    %vm362 = vcmask 123904
    %363 = vst.msk [vmem:[#allocation2] sm:$0x3] %vm362, %v361
    // Predicated region
    $region38: #{tpu_custom_call.1} parent=1 // pred_check
      _
    $region39: #{tpu_custom_call.1} parent=1 // pred_check_branch
      %365 = sbr.rel (0) target = $region41
    $region40: #{tpu_custom_call.1} parent=1 // pred_region
      %s367 = ssub.s32 32, 32
      %368 = vsyncadd [#allocation3], %s367
      %s370 = sshll.u32 [#allocation2], 4
      %s371 = int_to_ptr.vmem [resolvable:$true] %s370
      %373 = dma.vmem_to_hbm [thread:$0]  %s371, 32, %s9, [#allocation3]
    $region41: #{tpu_custom_call.1} parent=1 // pred_fallthru
      _
    // Predicated region
    $region42: #{tpu_custom_call.1} parent=1 // pred_check
      _
    $region43: #{tpu_custom_call.1} parent=1 // pred_check_branch
      %375 = sbr.rel (0) target = $region45
    $region44: #{tpu_custom_call.1} parent=1 // pred_region
      %376 = dma.done [#allocation3], 32
    $region45: #{tpu_custom_call.1} parent=1 // pred_fallthru
      _
    %377 = vsyncpa [#allocation3], 1

</llo_original>
